<compile_context>
chip_gen: v7x
topology: tpu7x:2x2x1
jax: 0.10.0
libtpu: 0.0.40
codegen_flags: <defaults>
</compile_context>

<pallas_src>
import functools

import jax
import jax.numpy as jnp
from jax.experimental import pallas as pl
from jax.experimental.pallas import tpu as pltpu


def _focal_kernel(logits_ref, target_ref, out_ref, *, alpha, gamma, eps):
    # logits_ref: (C, TM) in the input dtype; target_ref: (1, TM) narrow int; out_ref: (1, TM).
    x = logits_ref[...]                              # keep bf16 native on v6e/v7x VPU/EUP
    t = target_ref[...].astype(jnp.int32)            # (1, TM)

    # Softmax pieces over the class axis (axis 0 = sublane axis; C is small).
    m = jnp.max(x, axis=0, keepdims=True)
    e = jnp.exp(x - m)                               # EUP, input dtype

    # one_hot selects exactly one class => sum_c(one_hot * focal(p_c)) == focal(p_t):
    # gather only the target-class numerator; all transcendental row math is (1, TM) f32.
    classes = jax.lax.broadcasted_iota(jnp.int32, x.shape, 0)
    sel = classes == t
    # TODO(synk): out-of-range / ignore-index targets (e.g. 255) give loss ~ -alpha*log(eps)
    # here; mask them explicitly if such labels can occur.

    s = jnp.sum(e, axis=0, keepdims=True, dtype=jnp.float32)
    e_t = jnp.sum(jnp.where(sel, e, jnp.zeros_like(e)), axis=0, keepdims=True,
                  dtype=jnp.float32)

    p_t = e_t * pl.reciprocal(s, approx=False) + eps     # == softmax(x)[target] + eps
    one_minus = 1.0 - p_t
    if gamma == 2.0:
        weight = one_minus * one_minus            # default gamma: single VPU mul, no pow
    elif gamma == 1.0:
        weight = one_minus
    elif gamma == 0.0:
        weight = jnp.ones_like(one_minus)
    else:
        weight = jnp.power(one_minus, gamma)      # general (non-special) gamma path

    out_ref[...] = ((-alpha) * weight * jnp.log(p_t)).astype(out_ref.dtype)


def _round_up(n, m):
    return ((n + m - 1) // m) * m


def _vmem_capacity_bytes():
    try:
        return int(pltpu.get_tpu_info().vmem_capacity_bytes)
    except Exception:
        return 64 * 1024 * 1024    # conservative fallback (v7x per-TensorCore VMEM)


def _tile_vmem_bytes(tile_m, c, in_isz, tgt_isz, out_isz):
    """Estimated scoped-VMEM bytes for one grid step (double-buffered pipeline + temps)."""
    sub_in = 8 * (4 // in_isz)     # sublane padding: f32 -> 8, bf16 -> 16
    sub_tgt = 8 * (4 // tgt_isz)   # i32 -> 8, i16 -> 16, i8 -> 32
    sub_out = 8 * (4 // out_isz)
    logits_buf = 2 * _round_up(c, sub_in) * tile_m * in_isz      # pipelined input
    target_buf = 2 * _round_up(1, sub_tgt) * tile_m * tgt_isz    # pipelined input
    out_buf = 2 * _round_up(1, sub_out) * tile_m * out_isz       # pipelined output
    temps = 3 * _round_up(c, sub_in) * tile_m * in_isz           # (x - m), e, masked e
    rows = 8 * _round_up(1, 8) * tile_m * 4                      # (1, TM) f32 row temps
    return logits_buf + target_buf + out_buf + temps + rows


def _choose_tile(hw_pad, c, in_isz, tgt_isz, out_isz, vmem_budget, max_tile=8192):
    """Largest multiple of 128 dividing hw_pad whose per-step VMEM fits the budget."""
    best = 128
    t = 128
    cap = min(max_tile, hw_pad)
    while t <= cap:
        if hw_pad % t == 0 and _tile_vmem_bytes(t, c, in_isz, tgt_isz, out_isz) <= vmem_budget:
            best = t
        t += 128
    return best


def focal_loss_pallas(x_nchw, target_nhw, alpha, gamma=2.0, reduction="none",
                      eps=1e-6, tile_m=None):
    N, C, H, W = x_nchw.shape
    assert target_nhw.shape == (N, H, W)
    HW = H * W
    HW_pad = _round_up(HW, 128)

    # Narrow target stream over HBM (kernel is HBM-bound; int32 targets are ~20% of
    # read bytes at small C).
    if C <= 127:
        tgt_dtype = jnp.int8
    elif C <= 32767:
        tgt_dtype = jnp.int16
    else:
        tgt_dtype = jnp.int32

    # Free views of the NCHW input -- no transpose, no extra HBM traffic.
    logits_3d = x_nchw.reshape(N, C, HW)
    target_3d = target_nhw.reshape(N, 1, HW)
    if HW_pad != HW:
        # TODO(synk): replace host-side padding with a pl.cdiv grid + masked store
        # (pltpu.store(mask=...)) on the last tile to avoid the extra HBM copy.
        pad = HW_pad - HW
        logits_3d = jnp.pad(logits_3d, ((0, 0), (0, 0), (0, pad)))
        target_3d = jnp.pad(target_3d, ((0, 0), (0, 0), (0, pad)))
    target_3d = target_3d.astype(tgt_dtype)

    in_isz = jnp.dtype(x_nchw.dtype).itemsize
    tgt_isz = jnp.dtype(tgt_dtype).itemsize
    out_dtype = x_nchw.dtype                      # loss in input dtype (torch semantics)
    out_isz = jnp.dtype(out_dtype).itemsize

    vmem_cap = _vmem_capacity_bytes()
    vmem_budget = int(vmem_cap * 0.7)             # ~45 MiB on v7x (64), ~90 MiB on v5e/v6e (128)

    if tile_m is None:
        tile_m = _choose_tile(HW_pad, C, in_isz, tgt_isz, out_isz, vmem_budget)

    # v7x has two TensorCores sharing HBM: make sure there are >= 2 parallel grid steps.
    if N * (HW_pad // tile_m) < 2 and tile_m % 256 == 0:
        tile_m //= 2

    est = _tile_vmem_bytes(tile_m, C, in_isz, tgt_isz, out_isz)
    vmem_limit = min(max(vmem_budget, est + (4 << 20)), vmem_cap)

    kernel = functools.partial(_focal_kernel, alpha=float(alpha),
                               gamma=float(gamma), eps=float(eps))

    out_3d = pl.pallas_call(
        kernel,
        out_shape=jax.ShapeDtypeStruct((N, 1, HW_pad), out_dtype),
        grid_spec=pltpu.PrefetchScalarGridSpec(
            num_scalar_prefetch=0,
            grid=(N, HW_pad // tile_m),
            in_specs=[
                pl.BlockSpec((pl.Squeezed(), C, tile_m), lambda n, i: (n, 0, i)),
                pl.BlockSpec((pl.Squeezed(), 1, tile_m), lambda n, i: (n, 0, i)),
            ],
            out_specs=pl.BlockSpec((pl.Squeezed(), 1, tile_m), lambda n, i: (n, 0, i)),
        ),
        compiler_params=pltpu.CompilerParams(
            dimension_semantics=("parallel", "parallel"),
            vmem_limit_bytes=vmem_limit),
    )(logits_3d, target_3d)

    loss = out_3d[:, 0, :HW].reshape(N, H, W)
    if reduction == "none":
        return loss
    elif reduction == "mean":
        # TODO(synk): accumulate mean/sum in-kernel ('arbitrary' axis + scratch) to skip
        # the extra HBM round-trip of the full (N, H, W) loss.
        return jnp.mean(loss)
    elif reduction == "sum":
        return jnp.sum(loss)
    else:
        raise NotImplementedError(f"Invalid reduction mode: {reduction}")


def _focal_loss_ref(x_nchw, target_nhw, alpha, gamma, eps):
    p = jax.nn.softmax(x_nchw, axis=1) + eps
    one_hot = jax.nn.one_hot(target_nhw, x_nchw.shape[1], axis=1, dtype=x_nchw.dtype)
    weight = jnp.power(1.0 - p, gamma)
    focal = -alpha * weight * jnp.log(p)
    return jnp.sum(one_hot * focal, axis=1)


if __name__ == "__main__":
    # FocalLoss(alpha=0.5, gamma=2.0, reduction='none'); eps fixed to 1e-6 in __init__
    alpha, gamma, reduction, eps = 0.5, 2.0, "none", 1e-6

    key = jax.random.PRNGKey(0)
    k1, k2 = jax.random.split(key)
    N, C, H, W = 2, 4, 16, 16
    x = jax.random.normal(k1, (N, C, H, W), dtype=jnp.float32)
    target = jax.random.randint(k2, (N, H, W), 0, C, dtype=jnp.int32)

    loss = focal_loss_pallas(x, target, alpha, gamma, reduction, eps)
    loss = jax.block_until_ready(loss)

    ref = _focal_loss_ref(x, target, alpha, gamma, eps)
    assert loss.shape == (N, H, W)
    assert jnp.allclose(loss, ref, atol=1e-5, rtol=1e-5)
    print("KERNEL_OK")
</pallas_src>

<mosaic_0001>
module attributes {stable_mosaic.version = 11 : i64} {
  func.func @_focal_kernel(%arg0: i32, %arg1: i32, %arg2: memref<1x4x256xf32, #tpu.memory_space<vmem>>, %arg3: memref<1x1x256xi8, #tpu.memory_space<vmem>>, %arg4: memref<1x1x256xf32, #tpu.memory_space<vmem>>) attributes {dimension_semantics = [#tpu.dimension_semantics<parallel>, #tpu.dimension_semantics<parallel>], iteration_bounds = array<i64: 2, 1>, scalar_prefetch = 0 : i64, scratch_operands = 0 : i64, tpu.core_type = #tpu.core_type<tc>, window_params = [{transform_indices = @transform_0, window_bounds = array<i64: 1, 4, 256>}, {transform_indices = @transform_1, window_bounds = array<i64: 1, 1, 256>}, {transform_indices = @transform_2, window_bounds = array<i64: 1, 1, 256>}]} {
    %c0 = arith.constant 0 : index
    %c0_0 = arith.constant 0 : index
    %c0_1 = arith.constant 0 : index
    %0 = vector.load %arg2[%c0, %c0_0, %c0_1] : memref<1x4x256xf32, #tpu.memory_space<vmem>>, vector<1x4x256xf32>
    %1 = vector.shape_cast %0 : vector<1x4x256xf32> to vector<4x256xf32>
    %c0_2 = arith.constant 0 : index
    %c0_3 = arith.constant 0 : index
    %c0_4 = arith.constant 0 : index
    %2 = vector.load %arg3[%c0_2, %c0_3, %c0_4] : memref<1x1x256xi8, #tpu.memory_space<vmem>>, vector<1x1x256xi8>
    %3 = vector.shape_cast %2 : vector<1x1x256xi8> to vector<1x256xi8>
    %4 = arith.extsi %3 : vector<1x256xi8> to vector<1x256xi32>
    %cst = arith.constant dense<0xFF800000> : vector<256xf32>
    %5 = vector.multi_reduction <maximumf>, %1, %cst [0] : vector<4x256xf32> to vector<256xf32>
    %6 = vector.shape_cast %5 : vector<256xf32> to vector<1x256xf32>
    %7 = vector.broadcast %6 : vector<1x256xf32> to vector<4x256xf32>
    %8 = arith.subf %1, %7 : vector<4x256xf32>
    %9 = math.exp %8 : vector<4x256xf32>
    %10 = tpu.iota {dimensions = array<i32: 0>} : vector<4x256xi32>
    %11 = vector.broadcast %4 : vector<1x256xi32> to vector<4x256xi32>
    %12 = arith.cmpi eq, %10, %11 : vector<4x256xi32>
    %cst_5 = arith.constant dense<0.000000e+00> : vector<256xf32>
    %13 = vector.multi_reduction <add>, %9, %cst_5 [0] : vector<4x256xf32> to vector<256xf32>
    %14 = vector.shape_cast %13 : vector<256xf32> to vector<1x256xf32>
    %cst_6 = arith.constant 0.000000e+00 : f32
    %15 = vector.broadcast %cst_6 : f32 to vector<4x256xf32>
    %16 = arith.select %12, %9, %15 : vector<4x256xi1>, vector<4x256xf32>
    %cst_7 = arith.constant dense<0.000000e+00> : vector<256xf32>
    %17 = vector.multi_reduction <add>, %16, %cst_7 [0] : vector<4x256xf32> to vector<256xf32>
    %18 = vector.shape_cast %17 : vector<256xf32> to vector<1x256xf32>
    %19 = tpu.reciprocal %14 : vector<1x256xf32> -> vector<1x256xf32>
    %20 = arith.mulf %18, %19 : vector<1x256xf32>
    %cst_8 = arith.constant 9.99999997E-7 : f32
    %21 = vector.broadcast %cst_8 : f32 to vector<1x256xf32>
    %22 = arith.addf %20, %21 : vector<1x256xf32>
    %cst_9 = arith.constant 1.000000e+00 : f32
    %23 = vector.broadcast %cst_9 : f32 to vector<1x256xf32>
    %24 = arith.subf %23, %22 : vector<1x256xf32>
    %25 = arith.mulf %24, %24 : vector<1x256xf32>
    %cst_10 = arith.constant -5.000000e-01 : f32
    %26 = vector.broadcast %cst_10 : f32 to vector<1x256xf32>
    %27 = arith.mulf %26, %25 : vector<1x256xf32>
    %28 = math.log %22 : vector<1x256xf32>
    %29 = arith.mulf %27, %28 : vector<1x256xf32>
    %c0_11 = arith.constant 0 : index
    %c0_12 = arith.constant 0 : index
    %c0_13 = arith.constant 0 : index
    %30 = vector.load %arg4[%c0_11, %c0_12, %c0_13] : memref<1x1x256xf32, #tpu.memory_space<vmem>>, vector<1x1x256xf32>
    %31 = vector.shape_cast %30 : vector<1x1x256xf32> to vector<1x256xf32>
    %32 = vector.shape_cast %29 : vector<1x256xf32> to vector<1x1x256xf32>
    tpu.vector_store %arg4[%c0_11, %c0_12, %c0_13], %32 {strides = array<i32>} : memref<1x1x256xf32, #tpu.memory_space<vmem>>, vector<1x1x256xf32>,
    return
  }
  func.func @transform_0(%arg0: i32, %arg1: i32) -> (i32, i32, i32) {
    %c0_i32 = arith.constant 0 : i32
    %c0_i32_0 = arith.constant 0 : i32
    return %arg0, %c0_i32, %arg1 : i32, i32, i32
  }
  func.func @transform_1(%arg0: i32, %arg1: i32) -> (i32, i32, i32) {
    %c0_i32 = arith.constant 0 : i32
    %c0_i32_0 = arith.constant 0 : i32
    return %arg0, %c0_i32, %arg1 : i32, i32, i32
  }
  func.func @transform_2(%arg0: i32, %arg1: i32) -> (i32, i32, i32) {
    %c0_i32 = arith.constant 0 : i32
    %c0_i32_0 = arith.constant 0 : i32
    return %arg0, %c0_i32, %arg1 : i32, i32, i32
  }
}

</mosaic_0001>

<llo_original>
// kernel: tpu_custom_call.1
$region0: #{tpu_custom_call.1}
  #allocation0 [shape = 'u32[]', space=smem, size = 0x4, offset = 0x4, fixed_abs, tag = 'smem constant byte address 0x4 - core index']
  #allocation1 [shape = 'u32[144,128]{1,0:T(1,128)}', space=vmem, size = 0x12000, scoped, tag = 'internal scratch']
  %s0 = inlined_call_operand.hbm [shape: f32[2,4,256], index: 0, kind: input, shape index: {}]
  %s1 = inlined_call_operand.vmem [shape: s8[2,1,256], index: 1, kind: input, shape index: {}]
  %s2 = inlined_call_operand.hbm [shape: f32[2,1,256], index: 2, kind: output, shape index: {}]
  %s3 = sld [smem:[#allocation0]]
  $region45: #{tpu_custom_call.1} parent=0
    _
  %s5 = ssub.s32 1, %s3
  %s6 = scalar_select 0, %s5, %s3
  $region1: #{tpu_custom_call.1} parent=0
    #allocation2 [shape = 'u8[8192]{0}', space=vmem, size = 0x2000, scoped, tag = 'input window, operand 0']
    #allocation3 [shape = 's32[2]{0}', space=sflag, size = 0x8, scoped, tag = 'scoped memory for tpu_custom_call.1']
    #allocation4 [shape = 's32[2]{0}', space=sflag, size = 0x8, scoped, tag = 'scoped memory for tpu_custom_call.1']
    #allocation5 [shape = 'u8[2048]{0}', space=vmem, size = 0x800, scoped, tag = 'output window, operand 0']
    %7 = vsyncpa [#allocation3], 0
    %s8 = scalar_lea.sflag [#allocation3], 1
    %9 = vsyncpa %s8, 0
    %10 = vsyncpa [#allocation4], 0
    %s11 = scalar_lea.sflag [#allocation4], 1
    %12 = vsyncpa %s11, 0
    loop: start=0, step=1, limit=4
    $region2: #{tpu_custom_call.1} parent=1 // loop_pre_header
      _
    $region3: #{tpu_custom_call.1} parent=1 // loop_header
      %s14 = sphi 0, %s18
      %p15 = scmp.ge.s32.totalorder %s14, 4
      %s21 = sphi 0, %s33
      %s22 = sphi 0, %s29
      %s23 = sphi 0, %s21
      %s24 = sphi 0, %s22
      %s25 = sphi 0, %s23
      %s26 = sphi 0, %s24
      %s38 = sphi 0, %s40
      %s41 = sphi 0, %s38
      %s42 = sphi 0, %s41
      %s58 = sphi 0, %s42
      %s66 = sphi 0, %s68
      %s69 = sphi 0, %s66
      %s70 = sphi 0, %s69
      %s86 = sphi 0, %s70
      %s94 = sphi 0, %s96
      %s97 = sphi 0, %s94
      %s98 = sphi 0, %s97
      %s114 = sphi 0, %s98
    $region4: #{tpu_custom_call.1} parent=1 // loop_header_branch
      %17 = sbr.rel (%p15) target = $region8
    $region5: #{tpu_custom_call.1} parent=1 // loop_body
      %s19 = ssub.s32 %s14, 1
      %s20 = ssub.s32 %s14, 2
      %s27 = sadd.s32 1, %s22
      %p28 = scmp.ge.s32.totalorder %s27, 1
      %s29 = scalar_select %p28, 0, %s27
      %s30 = sadd.s32 1, %s21
      %s31 = scalar_select %p28, %s30, %s21
      %p32 = scmp.ge.s32.totalorder %s31, 2
      %s33 = scalar_select %p32, 0, %s31
      %s34 = ssub.s32 %s21, %s33
      %s35 = ssub.s32 %s22, %s29
      %s36 = sor.u32 %s34, %s35
      %p37 = scmp.eq.s32.totalorder %s36, 0
      %s39 = sadd.s32 %s38, 1
      %s40 = scalar_select %p37, %s38, %s39
      %p43 = pneg %p37
      %p44 = scmp.eq.s32.totalorder %s14, 1
      %p45 = por %p43, %p44
      %p46 = scmp.ne.s32.totalorder %s38, %s41
      %p47 = scmp.eq.s32.totalorder %s14, 0
      %p48 = por %p46, %p47
      %p49 = scmp.ne.s32.totalorder %s38, %s41
      %p50 = scmp.eq.s32.totalorder %s19, 1
      %p51 = por %p49, %p50
      %p52 = scmp.ne.s32.totalorder %s41, %s42
      %p53 = scmp.eq.s32.totalorder %s19, 0
      %p54 = por %p52, %p53
      %p55 = scmp.ne.s32.totalorder %s41, %s42
      %p56 = scmp.eq.s32.totalorder %s20, 1
      %p57 = por %p55, %p56
      %p59 = scmp.ne.s32.totalorder %s42, %s58
      %p60 = scmp.eq.s32.totalorder %s20, 0
      %p61 = por %p59, %p60
      %s62 = ssub.s32 %s21, %s33
      %s63 = ssub.s32 %s22, %s29
      %s64 = sor.u32 %s62, %s63
      %p65 = scmp.eq.s32.totalorder %s64, 0
      %s67 = sadd.s32 %s66, 1
      %s68 = scalar_select %p65, %s66, %s67
      %p71 = pneg %p65
      %p72 = scmp.eq.s32.totalorder %s14, 1
      %p73 = por %p71, %p72
      %p74 = scmp.ne.s32.totalorder %s66, %s69
      %p75 = scmp.eq.s32.totalorder %s14, 0
      %p76 = por %p74, %p75
      %p77 = scmp.ne.s32.totalorder %s66, %s69
      %p78 = scmp.eq.s32.totalorder %s19, 1
      %p79 = por %p77, %p78
      %p80 = scmp.ne.s32.totalorder %s69, %s70
      %p81 = scmp.eq.s32.totalorder %s19, 0
      %p82 = por %p80, %p81
      %p83 = scmp.ne.s32.totalorder %s69, %s70
      %p84 = scmp.eq.s32.totalorder %s20, 1
      %p85 = por %p83, %p84
      %p87 = scmp.ne.s32.totalorder %s70, %s86
      %p88 = scmp.eq.s32.totalorder %s20, 0
      %p89 = por %p87, %p88
      %s90 = ssub.s32 %s21, %s33
      %s91 = ssub.s32 %s22, %s29
      %s92 = sor.u32 %s90, %s91
      %p93 = scmp.eq.s32.totalorder %s92, 0
      %s95 = sadd.s32 %s94, 1
      %s96 = scalar_select %p93, %s94, %s95
      %p99 = pneg %p93
      %p100 = scmp.eq.s32.totalorder %s14, 1
      %p101 = por %p99, %p100
      %p102 = scmp.ne.s32.totalorder %s94, %s97
      %p103 = scmp.eq.s32.totalorder %s14, 0
      %p104 = por %p102, %p103
      %p105 = scmp.ne.s32.totalorder %s94, %s97
      %p106 = scmp.eq.s32.totalorder %s19, 1
      %p107 = por %p105, %p106
      %p108 = scmp.ne.s32.totalorder %s97, %s98
      %p109 = scmp.eq.s32.totalorder %s19, 0
      %p110 = por %p108, %p109
      %p111 = scmp.ne.s32.totalorder %s97, %s98
      %p112 = scmp.eq.s32.totalorder %s20, 1
      %p113 = por %p111, %p112
      %p115 = scmp.ne.s32.totalorder %s98, %s114
      %p116 = scmp.eq.s32.totalorder %s20, 0
      %p117 = por %p115, %p116
      %p118 = scmp.le.s32.totalorder 1, %s14
      %p119 = scmp.lt.s32.totalorder %s14, 3
      %p120 = pnand %p118, %p119
      %p121 = pneg %p120
      // Predicated region
      $region9: #{tpu_custom_call.1} parent=5 // pred_check
        _
      $region10: #{tpu_custom_call.1} parent=5 // pred_check_branch
        %123 = sbr.rel (%p120) target = $region12
      $region11: #{tpu_custom_call.1} parent=5 // pred_region
        %s124 = ssub.s32 %s14, 1
      $region12: #{tpu_custom_call.1} parent=5 // pred_fallthru
        _
      %p125 = scmp.lt.s32.totalorder %s14, 2
      // Predicated region
      $region13: #{tpu_custom_call.1} parent=5 // pred_check
        %p126 = pneg %p125
      $region14: #{tpu_custom_call.1} parent=5 // pred_check_branch
        %128 = sbr.rel (%p126) target = $region16
      $region15: #{tpu_custom_call.1} parent=5 // pred_region
        // Predicated region
        $region17: #{tpu_custom_call.1} parent=15 // pred_check
          %p129 = pneg %p48
        $region18: #{tpu_custom_call.1} parent=15 // pred_check_branch
          %131 = sbr.rel (%p129) target = $region20
        $region19: #{tpu_custom_call.1} parent=15 // pred_region
          %s132 = sand.u32 %s38, 1
          %s133 = scalar_lea.sflag [#allocation3], %s132
          %s134 = sand.u32 %s38, 1
          %s135 = smul.addr %s134, 8
          %s136 = scalar_lea.vmem [#allocation2], %s135
          %s137 = smul.u32 2, %s22
          %s139 = ssub.s32 128, 128
          %140 = vsyncadd %s133, %s139
          %s141 = smul.addr %s21, 2
          %s142 = sadd.s32 %s137, %s141
          %s143 = smul.addr %s142, 64
          %s144 = scalar_lea.hbm %s0, %s143
          %s146 = sshll.u32 %s136, 4
          %s147 = int_to_ptr.vmem [resolvable:$true] %s146
          %149 = dma.hbm_to_vmem [thread:$0]  %s144, 128, %s147, %s133
        $region20: #{tpu_custom_call.1} parent=15 // pred_fallthru
          _
        // Predicated region
        $region21: #{tpu_custom_call.1} parent=15 // pred_check
          %p150 = pneg %p76
        $region22: #{tpu_custom_call.1} parent=15 // pred_check_branch
          %152 = sbr.rel (%p150) target = $region24
        $region23: #{tpu_custom_call.1} parent=15 // pred_region
          %s153 = smul.u32 2, %s22
          %p154 = scmp.lt.s32.totalorder %s21, 1
          %s155 = scalar_select %p154, %s21, 1
          %p156 = scmp.lt.s32.totalorder %s153, 1
          %s157 = scalar_select %p156, %s153, 1
          %s158 = smul.addr %s155, 2
          %s159 = sadd.s32 %s157, %s158
          %s160 = scalar_lea.vmem %s1, %s159
          %s161 = smul.u32 2, %s22
        $region24: #{tpu_custom_call.1} parent=15 // pred_fallthru
          _
      $region16: #{tpu_custom_call.1} parent=5 // pred_fallthru
        _
      %p162 = scmp.le.s32.totalorder 1, %s14
      %p163 = scmp.lt.s32.totalorder %s14, 3
      %p164 = pnand %p162, %p163
      %p165 = pneg %p164
      // Predicated region
      $region25: #{tpu_custom_call.1} parent=5 // pred_check
        _
      $region26: #{tpu_custom_call.1} parent=5 // pred_check_branch
        %167 = sbr.rel (%p164) target = $region28
      $region27: #{tpu_custom_call.1} parent=5 // pred_region
        %s168 = ssub.s32 %s14, 1
        %s169 = sand.u32 %s41, 1
        %s170 = scalar_lea.sflag [#allocation3], %s169
        %s171 = sand.u32 %s41, 1
        %s172 = smul.addr %s171, 8
        %s173 = scalar_lea.vmem [#allocation2], %s172
        // Predicated region
        $region29: #{tpu_custom_call.1} parent=27 // pred_check
          %p174 = pneg %p54
        $region30: #{tpu_custom_call.1} parent=27 // pred_check_branch
          %176 = sbr.rel (%p174) target = $region32
        $region31: #{tpu_custom_call.1} parent=27 // pred_region
          %177 = dma.done %s170, 128
        $region32: #{tpu_custom_call.1} parent=27 // pred_fallthru
          _
        %s178 = sand.u32 %s41, 1
        %s179 = scalar_lea.sflag [#allocation3], %s178
        %s180 = sand.u32 %s41, 1
        %s181 = smul.addr %s180, 8
        %s182 = scalar_lea.vmem [#allocation2], %s181
        %p183 = pneg %p54
        %p184 = pneg %p51
        %s185 = smul.u32 2, %s24
        %p186 = scmp.lt.s32.totalorder %s23, 1
        %s187 = scalar_select %p186, %s23, 1
        %p188 = scmp.lt.s32.totalorder %s185, 1
        %s189 = scalar_select %p188, %s185, 1
        %s190 = smul.addr %s187, 2
        %s191 = sadd.s32 %s189, %s190
        %s192 = scalar_lea.vmem %s1, %s191
        %p193 = pneg %p82
        %p194 = pneg %p79
        %p195 = pneg %p110
        %p196 = pneg %p107
        %s197 = sand.u32 %s97, 1
        %s198 = scalar_lea.sflag [#allocation4], %s197
        %s199 = sand.u32 %s97, 1
        %s200 = smul.addr %s199, 2
        %s201 = scalar_lea.vmem [#allocation5], %s200
        %s202 = smul.u32 2, %s24
        %s203 = smul.u32 2, %s24
        %p204 = scmp.lt.s32.totalorder %s23, 1
        %s205 = scalar_select %p204, %s23, 1
        %p206 = scmp.lt.s32.totalorder %s203, 1
        %s207 = scalar_select %p206, %s203, 1
        %s208 = smul.addr %s205, 2
        %s209 = sadd.s32 %s207, %s208
        %s210 = scalar_lea.vmem %s1, %s209
        %s211 = smul.u32 2, %s24
        %s212 = smul.u32 2, %s24
        %v213 = vld [vmem:[%s173] sm:$0xff]
        %v214 = vld [vmem:[%s210] sm:$0x3]
        %v215 = vunpack.c.0.s8 %v214
        %v217 = vcombine.high %v213, %v213
        %vm219 = vcmask 1043456
        %v220 = vsel %vm219, %v213, -inf
        %v221 = vrot.slane %v220, 4
        %v222 = vmax.f32 %v220, %v221
        %v223 = vrot.slane %v222, 2
        %v224 = vmax.f32 %v222, %v223
        %v225 = vrot.slane %v224, 1
        %v226 = vmax.f32 %v224, %v225
        %v227 = vsel %vm219, %v217, -inf
        %v228 = vrot.slane %v227, 4
        %v229 = vmax.f32 %v227, %v228
        %v230 = vrot.slane %v229, 2
        %v231 = vmax.f32 %v229, %v230
        %v232 = vrot.slane %v231, 1
        %v233 = vmax.f32 %v231, %v232
        %v236 = vcombine.low %v226, %v233
        %v238 = vsub.f32 %v213, %v236
        %v239 = vmul.f32 %v238, 1.442695
        %v240 = vpow.pop %v239
        %v241 = vlaneseq
        %v242 = vshrl.u32 %v241, 7
        %v243 = vlaneseq
        %v244 = vshrl.u32 %v243, 7
        %v245 = vsub.s32 0, %v244
        %v246 = vrot.slane %v215, %v245
        %v247 = vlaneseq
        %v248 = vshrl.u32 %v247, 7
        %v249 = vsub.s32 4, %v248
        %v250 = vrot.slane %v215, %v249
        %v251 = vlaneseq
        %v252 = vshrl.u32 %v251, 7
        %v253 = vsub.s32 0, %v252
        %v254 = vrot.slane %v246, %v253
        %v255 = vlaneseq
        %v256 = vshrl.u32 %v255, 7
        %v257 = vsub.s32 0, %v256
        %v258 = vrot.slane %v250, %v257
        %vm259 = vcmp.eq.s32.totalorder %v242, %v254
        %vm260 = vcmp.eq.s32.totalorder %v242, %v258
        %v262 = vcombine.high %v240, %v240
        %v264 = vsel %vm219, %v240, 0.0
        %v265 = vrot.slane %v264, 4
        %v266 = vadd.f32 %v264, %v265
        %v267 = vrot.slane %v266, 2
        %v268 = vadd.f32 %v266, %v267
        %v269 = vrot.slane %v268, 1
        %v270 = vadd.f32 %v268, %v269
        %v271 = vsel %vm219, %v262, 0.0
        %v272 = vrot.slane %v271, 4
        %v273 = vadd.f32 %v271, %v272
        %v274 = vrot.slane %v273, 2
        %v275 = vadd.f32 %v273, %v274
        %v276 = vrot.slane %v275, 1
        %v277 = vadd.f32 %v275, %v276
        %v278 = vsel %vm259, %v240, 0.0
        %v279 = vsel %vm260, %v262, 0.0
        %v280 = vsel %vm219, %v278, 0.0
        %v281 = vrot.slane %v280, 4
        %v282 = vadd.f32 %v280, %v281
        %v283 = vrot.slane %v282, 2
        %v284 = vadd.f32 %v282, %v283
        %v285 = vrot.slane %v284, 1
        %v286 = vadd.f32 %v284, %v285
        %v287 = vsel %vm219, %v279, 0.0
        %v288 = vrot.slane %v287, 4
        %v289 = vadd.f32 %v287, %v288
        %v290 = vrot.slane %v289, 2
        %v291 = vadd.f32 %v289, %v290
        %v292 = vrot.slane %v291, 1
        %v293 = vadd.f32 %v291, %v292
        %v294 = vrcp.pop %v270
        %v295 = vrcp.pop %v277
        %v296 = vmul.f32 %v286, %v294
        %v297 = vmul.f32 %v293, %v295
        %v298 = vadd.f32 %v296, 1e-06
        %v299 = vadd.f32 %v297, 1e-06
        %v300 = vsub.f32 1.0, %v298
        %v301 = vsub.f32 1.0, %v299
        %v302 = vmul.f32 %v300, %v300
        %v303 = vmul.f32 %v301, %v301
        %v304 = vmul.f32 %v302, -0.5
        %v305 = vmul.f32 %v303, -0.5
        %v306 = vlog2.pop %v298
        %v307 = vmul.f32 %v306, 0.6931472
        %v308 = vlog2.pop %v299
        %v309 = vmul.f32 %v308, 0.6931472
        %v310 = vmul.f32 %v304, %v307
        %v311 = vmul.f32 %v305, %v309
        %v314 = vcombine.low %v310, %v311
        %v316 = vunpack.c.l.s4 1966171168
        %v317 = vunpack.c.0.s8 %v316
        %v318 = vlaneseq
        %v319 = vshrl.u32 %v318, 7
        %v320 = vsub.s32 %v317, %v319
        %v321 = vrot.slane %v314, %v320
        %v323 = vunpack.c.l.s4 1966171168
        %v324 = vunpack.c.0.s8 %v323
        %v325 = vlaneseq
        %v326 = vshrl.u32 %v325, 7
        %v327 = vsub.s32 %v324, %v326
        %v328 = vrot.slane %v321, %v327
        %v330 = vlaneseq
        %vm331 = vcmp.ge.s32.totalorder %v330, 0
        %vm332 = vcmp.lt.s32.totalorder %v330, 256
        %vm333 = vmand %vm331, %vm332
        %334 = vst.msk [vmem:[%s201] sm:$0x3] %vm333, %v328
        %s335 = sand.u32 %s97, 1
        %s336 = scalar_lea.sflag [#allocation4], %s335
        %s337 = sand.u32 %s97, 1
        %s338 = smul.addr %s337, 2
        %s339 = scalar_lea.vmem [#allocation5], %s338
        // Predicated region
        $region33: #{tpu_custom_call.1} parent=27 // pred_check
          %p340 = pneg %p107
        $region34: #{tpu_custom_call.1} parent=27 // pred_check_branch
          %342 = sbr.rel (%p340) target = $region36
        $region35: #{tpu_custom_call.1} parent=27 // pred_region
          %s343 = smul.u32 2, %s24
          %s345 = ssub.s32 32, 32
          %346 = vsyncadd %s336, %s345
          %s347 = smul.addr %s23, 2
          %s348 = sadd.s32 %s343, %s347
          %s349 = smul.addr %s348, 16
          %s350 = scalar_lea.hbm %s2, %s349
          %s352 = sshll.u32 %s339, 4
          %s353 = int_to_ptr.vmem [resolvable:$true] %s352
          %355 = dma.vmem_to_hbm [thread:$0]  %s353, 32, %s350, %s336
        $region36: #{tpu_custom_call.1} parent=27 // pred_fallthru
          _
      $region28: #{tpu_custom_call.1} parent=5 // pred_fallthru
        _
      %p356 = scmp.le.s32.totalorder 2, %s14
      // Predicated region
      $region37: #{tpu_custom_call.1} parent=5 // pred_check
        %p357 = pneg %p356
      $region38: #{tpu_custom_call.1} parent=5 // pred_check_branch
        %359 = sbr.rel (%p357) target = $region40
      $region39: #{tpu_custom_call.1} parent=5 // pred_region
        %s360 = ssub.s32 %s14, 2
        // Predicated region
        $region41: #{tpu_custom_call.1} parent=39 // pred_check
          %p361 = pneg %p113
        $region42: #{tpu_custom_call.1} parent=39 // pred_check_branch
          %363 = sbr.rel (%p361) target = $region44
        $region43: #{tpu_custom_call.1} parent=39 // pred_region
          %s364 = sand.u32 %s98, 1
          %s365 = scalar_lea.sflag [#allocation4], %s364
          %s366 = sand.u32 %s98, 1
          %s367 = smul.addr %s366, 2
          %s368 = scalar_lea.vmem [#allocation5], %s367
          %369 = dma.done %s365, 32
        $region44: #{tpu_custom_call.1} parent=39 // pred_fallthru
          _
      $region40: #{tpu_custom_call.1} parent=5 // pred_fallthru
        _
    $region6: #{tpu_custom_call.1} parent=1 // loop_footer
      %s18 = sadd.s32 1, %s14
    $region7: #{tpu_custom_call.1} parent=1 // loop_footer_branch
      %13 = sbr.rel target = $region3
    $region8: #{tpu_custom_call.1} parent=1 // loop_exit
      _
    %370 = vsyncpa [#allocation3], 1
    %s371 = scalar_lea.sflag [#allocation3], 1
    %372 = vsyncpa %s371, 1
    %373 = vsyncpa [#allocation4], 1
    %s374 = scalar_lea.sflag [#allocation4], 1
    %375 = vsyncpa %s374, 1

</llo_original>
